<compile_context>
chip_gen: v7x
topology: tpu7x:2x2x1
jax: 0.10.0
libtpu: 0.0.40
codegen_flags: <defaults>
</compile_context>

<pallas_src>
import functools

import jax
import jax.numpy as jnp
from jax.experimental import pallas as pl
from jax.experimental.pallas import tpu as pltpu


def _round_up(x, m):
    return ((x + m - 1) // m) * m


# ----------------------------------------------------------------------------
# Kernel
# ----------------------------------------------------------------------------
def _actor_critic_kernel(x_ref, w1_ref, b1_ref, wpi_ref, wv_ref, b2_ref,
                         out_ref, *, actions, hidden):
    # x: (TILE_B, D) f32 ; w1: (D, 2H) bf16 ; b1: (1, 2H) f32
    # wpi: (H, N_PAD) bf16 ; wv: (1, H) f32 ; b2: (1, N_PAD) f32
    n_pad = out_ref.shape[-1]

    # In-kernel cast rides free on the VPU under the MXU.
    x = x_ref[...].astype(w1_ref.dtype)

    # Fused layer 1: both branches in one MXU pass, one VPU bias+relu pass.
    h = jnp.dot(x, w1_ref[...], preferred_element_type=jnp.float32)
    h = jnp.maximum(h + b1_ref[...], 0.0)                      # (TILE_B, 2H) f32

    h_pi = h[:, :hidden]                                       # lane-aligned slices
    h_v = h[:, hidden:]

    # pi head: single MXU matmul into the padded lane-dense slab.
    pi = jnp.dot(h_pi.astype(wpi_ref.dtype), wpi_ref[...],
                 preferred_element_type=jnp.float32)           # (TILE_B, N_PAD)

    # v head: VPU multiply + XLU row-sum (MXU has no work to do here).
    v = jnp.sum(h_v * wv_ref[...], axis=-1, keepdims=True)     # (TILE_B, 1) f32

    # Merge v into column `actions` of the same slab (one VPU select).
    col = jax.lax.broadcasted_iota(jnp.int32, (1, n_pad), 1)
    out = pi + b2_ref[...] + jnp.where(col == actions, v, 0.0)
    out_ref[...] = out.astype(out_ref.dtype)


# ----------------------------------------------------------------------------
# Parameter handling
# ----------------------------------------------------------------------------
def init_params(key, input_dim, actions, hidden=256):
    """PyTorch nn.Linear-style init: U(-1/sqrt(fan_in), 1/sqrt(fan_in)).
    Weights stored pre-transposed as (in, out)."""
    ks = jax.random.split(key, 8)

    def lin(kw, kb, fan_in, fan_out):
        bound = 1.0 / jnp.sqrt(jnp.float32(fan_in))
        w = jax.random.uniform(kw, (fan_in, fan_out), jnp.float32, -bound, bound)
        b = jax.random.uniform(kb, (1, fan_out), jnp.float32, -bound, bound)
        return w, b

    w_pi1, b_pi1 = lin(ks[0], ks[1], input_dim, hidden)
    w_v1, b_v1 = lin(ks[2], ks[3], input_dim, hidden)
    w_pi, b_pi = lin(ks[4], ks[5], hidden, actions)
    w_v, b_v = lin(ks[6], ks[7], hidden, 1)
    return {
        "w_pi1": w_pi1, "b_pi1": b_pi1,
        "w_v1": w_v1, "b_v1": b_v1,
        "w_pi": w_pi, "b_pi": b_pi,
        "w_v": w_v, "b_v": b_v,
    }


def fuse_params(params, compute_dtype=jnp.bfloat16):
    """Build the fused layer-1 weight/bias, the 128-padded pi head weight, the
    v head row and the fused head bias.  Done once, outside the kernel.
    Returns a dict containing ONLY arrays (jit-safe pytree)."""
    hidden = params["w_pi1"].shape[1]
    actions = params["w_pi"].shape[1]
    n_pad = _round_up(max(actions + 1, 128), 128)   # lane-dense output width

    # Layer 1: (D, 2H), (1, 2H)
    w1 = jnp.concatenate([params["w_pi1"], params["w_v1"]], axis=1)
    b1 = jnp.concatenate([params["b_pi1"], params["b_v1"]], axis=1)

    # pi head, padded to n_pad lanes: (H, n_pad)
    wpi = jnp.zeros((hidden, n_pad), jnp.float32)
    wpi = wpi.at[:, :actions].set(params["w_pi"])

    # v head as a broadcast row (1, H), kept f32 for the VPU path.
    wv = params["w_v"].T

    # Fused head bias: pi bias in [:actions], v bias in column `actions`.
    b2 = jnp.zeros((1, n_pad), jnp.float32)
    b2 = b2.at[:, :actions].set(params["b_pi"])
    b2 = b2.at[:, actions:actions + 1].set(params["b_v"])

    return {
        "w1": w1.astype(compute_dtype),
        "b1": b1.astype(jnp.float32),
        "wpi": wpi.astype(compute_dtype),
        "wv": wv.astype(jnp.float32),
        "b2": b2.astype(jnp.float32),
    }


# ----------------------------------------------------------------------------
# Wrapper
# ----------------------------------------------------------------------------
@functools.partial(jax.jit, static_argnames=("actions", "tile_b"))
def actor_critic_forward(state, fused, *, actions, tile_b=None):
    """state: (B, input_dim) float32.  fused: output of fuse_params().
    Returns (pi, v) as float32 of shapes (B, actions) and (B, 1)."""
    w1, b1, wpi, wv, b2 = (fused["w1"], fused["b1"], fused["wpi"],
                           fused["wv"], fused["b2"])
    B, D = state.shape
    two_h = w1.shape[1]
    hidden = two_h // 2
    n_pad = wpi.shape[1]

    # Batch tiling: multiples of 8 sublanes; >= 2 grid steps whenever B > 8 so
    # both v7x TensorCores get work; cap 1024 rows/tile (~5 MiB VMEM peak).
    b8 = _round_up(B, 8)
    if tile_b is None:
        n_tiles = 1 if b8 <= 8 else max(2, pl.cdiv(b8, 1024))
        tile_b = _round_up(pl.cdiv(b8, n_tiles), 8)
    tile_b = max(8, _round_up(tile_b, 8))

    x = state
    if b8 != B:                      # at most 7 junk rows, no full-array copy
        x = jnp.pad(x, ((0, b8 - B), (0, 0)))

    grid = (pl.cdiv(b8, tile_b),)
    kernel = functools.partial(_actor_critic_kernel, actions=actions,
                               hidden=hidden)
    out = pl.pallas_call(
        kernel,
        out_shape=jax.ShapeDtypeStruct((b8, n_pad), jnp.float32),
        grid=grid,
        in_specs=[
            pl.BlockSpec((tile_b, D), lambda i: (i, 0)),       # batch-tiled state
            pl.BlockSpec((D, two_h), lambda i: (0, 0)),        # resident weights
            pl.BlockSpec((1, two_h), lambda i: (0, 0)),
            pl.BlockSpec((hidden, n_pad), lambda i: (0, 0)),
            pl.BlockSpec((1, hidden), lambda i: (0, 0)),
            pl.BlockSpec((1, n_pad), lambda i: (0, 0)),
        ],
        out_specs=pl.BlockSpec((tile_b, n_pad), lambda i: (i, 0)),
        compiler_params=pltpu.CompilerParams(
            dimension_semantics=("parallel",),                 # shard batch across TCs
        ),
    )(x, w1, b1, wpi, wv, b2)

    pi = out[:B, :actions]
    v = out[:B, actions:actions + 1]
    return pi, v


def reference_forward(state, params):
    """Pure-JAX f32 reference of the PyTorch forward()."""
    h_pi = jnp.maximum(state @ params["w_pi1"] + params["b_pi1"], 0.0)
    h_v = jnp.maximum(state @ params["w_v1"] + params["b_v1"], 0.0)
    pi = h_pi @ params["w_pi"] + params["b_pi"]
    v = h_v @ params["w_v"] + params["b_v"]
    return pi, v


# TODO(synk): CategoricalMasked sampling, loss/return computation and the env
# training loop have no Pallas equivalent here; only forward() is implemented.

if __name__ == "__main__":
    # Small shapes consistent with the module: flattened board observation
    # (input_dim features) -> 256 hidden per branch -> `actions` logits + 1 value.
    B, INPUT_DIM, ACTIONS = 8, 64, 16

    key = jax.random.PRNGKey(0)
    k_state, k_params = jax.random.split(key)

    state = jax.random.normal(k_state, (B, INPUT_DIM), jnp.float32)
    params = init_params(k_params, INPUT_DIM, ACTIONS)

    # Fuse once (per-model, not per-call).  bf16 compute is the default (MXU
    # native on v5e/v6e/v7x); pass compute_dtype=jnp.float32 for exactness.
    fused = fuse_params(params, compute_dtype=jnp.bfloat16)

    pi, v = actor_critic_forward(state, fused, actions=ACTIONS)
    jax.block_until_ready((pi, v))

    # Correctness check against the pure-JAX f32 reference (bf16-compute
    # tolerance: K=64 / K=256 contractions with f32 accumulation).
    pi_ref, v_ref = reference_forward(state, params)
    assert pi.shape == (B, ACTIONS) and v.shape == (B, 1)
    assert jnp.allclose(pi, pi_ref, atol=2e-2, rtol=2e-2)
    assert jnp.allclose(v, v_ref, atol=2e-2, rtol=2e-2)

    print("KERNEL_OK")
</pallas_src>

<mosaic_0001>
module attributes {stable_mosaic.version = 11 : i64} {
  func.func @_actor_critic_kernel(%arg0: i32, %arg1: memref<8x64xf32, #tpu.memory_space<vmem>>, %arg2: memref<64x512xbf16, #tpu.memory_space<vmem>>, %arg3: memref<1x512xf32, #tpu.memory_space<vmem>>, %arg4: memref<256x128xbf16, #tpu.memory_space<vmem>>, %arg5: memref<1x256xf32, #tpu.memory_space<vmem>>, %arg6: memref<1x128xf32, #tpu.memory_space<vmem>>, %arg7: memref<8x128xf32, #tpu.memory_space<vmem>>) attributes {dimension_semantics = [#tpu.dimension_semantics<parallel>], iteration_bounds = array<i64: 1>, scalar_prefetch = 0 : i64, scratch_operands = 0 : i64, tpu.core_type = #tpu.core_type<tc>, window_params = [{transform_indices = @transform_0, window_bounds = array<i64: 8, 64>}, {pipeline_mode = #tpu.pipeline_mode<synchronous>, transform_indices = @transform_1, window_bounds = array<i64: 64, 512>}, {pipeline_mode = #tpu.pipeline_mode<synchronous>, transform_indices = @transform_2, window_bounds = array<i64: 1, 512>}, {pipeline_mode = #tpu.pipeline_mode<synchronous>, transform_indices = @transform_3, window_bounds = array<i64: 256, 128>}, {pipeline_mode = #tpu.pipeline_mode<synchronous>, transform_indices = @transform_4, window_bounds = array<i64: 1, 256>}, {pipeline_mode = #tpu.pipeline_mode<synchronous>, transform_indices = @transform_5, window_bounds = array<i64: 1, 128>}, {transform_indices = @transform_6, window_bounds = array<i64: 8, 128>}]} {
    %c0 = arith.constant 0 : index
    %c0_0 = arith.constant 0 : index
    %0 = vector.load %arg1[%c0, %c0_0] : memref<8x64xf32, #tpu.memory_space<vmem>>, vector<8x64xf32>
    %1 = arith.truncf %0 : vector<8x64xf32> to vector<8x64xbf16>
    %c0_1 = arith.constant 0 : index
    %c0_2 = arith.constant 0 : index
    %2 = vector.load %arg2[%c0_1, %c0_2] : memref<64x512xbf16, #tpu.memory_space<vmem>>, vector<64x512xbf16>
    %cst = arith.constant dense<0.000000e+00> : vector<8x512xf32>
    %3 = tpu.matmul %1, %2, %cst {dimension_numbers = #tpu.dot_dimension_numbers<[1], [0], [0], [1], [0, 0, 1, 1], [], []>} : vector<8x64xbf16>, vector<64x512xbf16>, vector<8x512xf32> -> vector<8x512xf32>
    %c0_3 = arith.constant 0 : index
    %c0_4 = arith.constant 0 : index
    %4 = vector.load %arg3[%c0_3, %c0_4] : memref<1x512xf32, #tpu.memory_space<vmem>>, vector<1x512xf32>
    %5 = vector.broadcast %4 : vector<1x512xf32> to vector<8x512xf32>
    %6 = arith.addf %3, %5 : vector<8x512xf32>
    %cst_5 = arith.constant 0.000000e+00 : f32
    %7 = vector.broadcast %cst_5 : f32 to vector<8x512xf32>
    %8 = arith.maximumf %6, %7 : vector<8x512xf32>
    %9 = vector.extract_strided_slice %8 {offsets = [0, 0], sizes = [8, 256], strides = [1, 1]} : vector<8x512xf32> to vector<8x256xf32>
    %10 = vector.extract_strided_slice %8 {offsets = [0, 256], sizes = [8, 256], strides = [1, 1]} : vector<8x512xf32> to vector<8x256xf32>
    %11 = arith.truncf %9 : vector<8x256xf32> to vector<8x256xbf16>
    %c0_6 = arith.constant 0 : index
    %c0_7 = arith.constant 0 : index
    %12 = vector.load %arg4[%c0_6, %c0_7] : memref<256x128xbf16, #tpu.memory_space<vmem>>, vector<256x128xbf16>
    %cst_8 = arith.constant dense<0.000000e+00> : vector<8x128xf32>
    %13 = tpu.matmul %11, %12, %cst_8 {dimension_numbers = #tpu.dot_dimension_numbers<[1], [0], [0], [1], [0, 0, 1, 1], [], []>} : vector<8x256xbf16>, vector<256x128xbf16>, vector<8x128xf32> -> vector<8x128xf32>
    %c0_9 = arith.constant 0 : index
    %c0_10 = arith.constant 0 : index
    %14 = vector.load %arg5[%c0_9, %c0_10] : memref<1x256xf32, #tpu.memory_space<vmem>>, vector<1x256xf32>
    %15 = vector.broadcast %14 : vector<1x256xf32> to vector<8x256xf32>
    %16 = arith.mulf %10, %15 : vector<8x256xf32>
    %cst_11 = arith.constant dense<0.000000e+00> : vector<8xf32>
    %17 = vector.multi_reduction <add>, %16, %cst_11 [1] : vector<8x256xf32> to vector<8xf32>
    %18 = vector.shape_cast %17 : vector<8xf32> to vector<8x1xf32>
    %19 = tpu.iota {dimensions = array<i32: 1>} : vector<1x128xi32>
    %c0_12 = arith.constant 0 : index
    %c0_13 = arith.constant 0 : index
    %20 = vector.load %arg6[%c0_12, %c0_13] : memref<1x128xf32, #tpu.memory_space<vmem>>, vector<1x128xf32>
    %21 = vector.broadcast %20 : vector<1x128xf32> to vector<8x128xf32>
    %22 = arith.addf %13, %21 : vector<8x128xf32>
    %c16_i32 = arith.constant 16 : i32
    %23 = vector.broadcast %c16_i32 : i32 to vector<1x128xi32>
    %24 = arith.cmpi eq, %19, %23 : vector<1x128xi32>
    %cst_14 = arith.constant 0.000000e+00 : f32
    %25 = vector.shape_cast %24 : vector<1x128xi1> to vector<1x128xi1>
    %26 = vector.broadcast %25 : vector<1x128xi1> to vector<8x128xi1>
    %27 = vector.shape_cast %18 : vector<8x1xf32> to vector<8x1xf32>
    %28 = vector.broadcast %27 : vector<8x1xf32> to vector<8x128xf32>
    %29 = vector.broadcast %cst_14 : f32 to vector<8x128xf32>
    %30 = arith.select %26, %28, %29 : vector<8x128xi1>, vector<8x128xf32>
    %31 = arith.addf %22, %30 : vector<8x128xf32>
    %c0_15 = arith.constant 0 : index
    %c0_16 = arith.constant 0 : index
    %32 = vector.load %arg7[%c0_15, %c0_16] : memref<8x128xf32, #tpu.memory_space<vmem>>, vector<8x128xf32>
    tpu.vector_store %arg7[%c0_15, %c0_16], %31 {strides = array<i32>} : memref<8x128xf32, #tpu.memory_space<vmem>>, vector<8x128xf32>,
    return
  }
  func.func @transform_0(%arg0: i32) -> (i32, i32) {
    %c0_i32 = arith.constant 0 : i32
    %c0_i32_0 = arith.constant 0 : i32
    return %arg0, %c0_i32 : i32, i32
  }
  func.func @transform_1(%arg0: i32) -> (i32, i32) {
    %c0_i32 = arith.constant 0 : i32
    %c0_i32_0 = arith.constant 0 : i32
    %c0_i32_1 = arith.constant 0 : i32
    return %c0_i32, %c0_i32_0 : i32, i32
  }
  func.func @transform_2(%arg0: i32) -> (i32, i32) {
    %c0_i32 = arith.constant 0 : i32
    %c0_i32_0 = arith.constant 0 : i32
    %c0_i32_1 = arith.constant 0 : i32
    return %c0_i32, %c0_i32_0 : i32, i32
  }
  func.func @transform_3(%arg0: i32) -> (i32, i32) {
    %c0_i32 = arith.constant 0 : i32
    %c0_i32_0 = arith.constant 0 : i32
    %c0_i32_1 = arith.constant 0 : i32
    return %c0_i32, %c0_i32_0 : i32, i32
  }
  func.func @transform_4(%arg0: i32) -> (i32, i32) {
    %c0_i32 = arith.constant 0 : i32
    %c0_i32_0 = arith.constant 0 : i32
    %c0_i32_1 = arith.constant 0 : i32
    return %c0_i32, %c0_i32_0 : i32, i32
  }
  func.func @transform_5(%arg0: i32) -> (i32, i32) {
    %c0_i32 = arith.constant 0 : i32
    %c0_i32_0 = arith.constant 0 : i32
    %c0_i32_1 = arith.constant 0 : i32
    return %c0_i32, %c0_i32_0 : i32, i32
  }
  func.func @transform_6(%arg0: i32) -> (i32, i32) {
    %c0_i32 = arith.constant 0 : i32
    %c0_i32_0 = arith.constant 0 : i32
    return %arg0, %c0_i32 : i32, i32
  }
}

</mosaic_0001>

<llo_original>
// kernel: actor_critic_forward.1
$region0: #{actor_critic_forward.1}
  #allocation0 [shape = 'u32[]', space=smem, size = 0x4, offset = 0x4, fixed_abs, tag = 'smem constant byte address 0x4 - core index']
  #allocation1 [shape = 'u32[144,128]{1,0:T(1,128)}', space=vmem, size = 0x12000, scoped, tag = 'internal scratch']
  %s0 = inlined_call_operand.hbm [shape: f32[8,64], index: 0, kind: input, shape index: {}]
  %s1 = inlined_call_operand.hbm [shape: bf16[64,512], index: 1, kind: input, shape index: {}]
  %s2 = inlined_call_operand.hbm [shape: f32[1,512], index: 2, kind: input, shape index: {}]
  %s3 = inlined_call_operand.hbm [shape: bf16[256,128], index: 3, kind: input, shape index: {}]
  %s4 = inlined_call_operand.vmem [shape: f32[1,256], index: 4, kind: input, shape index: {}]
  %s5 = inlined_call_operand.vmem [shape: f32[1,128], index: 5, kind: input, shape index: {}]
  %s6 = inlined_call_operand.vmem [shape: f32[8,128], index: 6, kind: output, shape index: {}]
  %s7 = sld [smem:[#allocation0]]
  $region50: #{actor_critic_forward.1} parent=0
    _
  %s9 = ssub.s32 1, %s7
  %s10 = scalar_select 0, %s9, %s7
  $region1: #{actor_critic_forward.1} parent=0
    #allocation2 [shape = 'u8[4096]{0}', space=vmem, size = 0x1000, scoped, tag = 'input window, operand 0, single buffered']
    #allocation3 [shape = 's32[1]{0}', space=sflag, size = 0x4, scoped, tag = 'scoped memory for actor_critic_forward.1']
    #allocation4 [shape = 'u8[65536]{0}', space=vmem, size = 0x10000, scoped, tag = 'input window, operand 1, single buffered']
    #allocation5 [shape = 's32[1]{0}', space=sflag, size = 0x4, scoped, tag = 'scoped memory for actor_critic_forward.1']
    #allocation6 [shape = 'u8[2048]{0}', space=vmem, size = 0x800, scoped, tag = 'input window, operand 2, single buffered']
    #allocation7 [shape = 'u8[65536]{0}', space=vmem, size = 0x10000, scoped, tag = 'input window, operand 3, single buffered']
    #allocation8 [shape = 's32[1]{0}', space=sflag, size = 0x4, scoped, tag = 'scoped memory for actor_critic_forward.1']
    %11 = vsyncpa [#allocation3], 0
    %12 = vsyncpa [#allocation5], 0
    %13 = vsyncpa [#allocation8], 0
    // Predicated region
    $region2: #{actor_critic_forward.1} parent=1 // pred_check
      _
    $region3: #{actor_critic_forward.1} parent=1 // pred_check_branch
      %15 = sbr.rel (0) target = $region5
    $region4: #{actor_critic_forward.1} parent=1 // pred_region
      %s17 = ssub.s32 128, 128
      %18 = vsyncadd [#allocation3], %s17
      %s20 = sshll.u32 [#allocation2], 4
      %s21 = int_to_ptr.vmem [resolvable:$true] %s20
      %23 = dma.hbm_to_vmem [thread:$0]  %s0, 128, %s21, [#allocation3]
    $region5: #{actor_critic_forward.1} parent=1 // pred_fallthru
      _
    // Predicated region
    $region6: #{actor_critic_forward.1} parent=1 // pred_check
      _
    $region7: #{actor_critic_forward.1} parent=1 // pred_check_branch
      %25 = sbr.rel (0) target = $region9
    $region8: #{actor_critic_forward.1} parent=1 // pred_region
      %s27 = ssub.s32 2048, 2048
      %28 = vsyncadd [#allocation5], %s27
      %s29 = sshll.u32 [#allocation4], 4
      %s30 = int_to_ptr.vmem [resolvable:$true] %s29
      %35 = dma.hbm_to_vmem [thread:$0]  %s1, 2048, %s30, [#allocation5], 256, 256, 16
    $region9: #{actor_critic_forward.1} parent=1 // pred_fallthru
      _
    // Predicated region
    $region10: #{actor_critic_forward.1} parent=1 // pred_check
      _
    $region11: #{actor_critic_forward.1} parent=1 // pred_check_branch
      %37 = sbr.rel (0) target = $region13
    $region12: #{actor_critic_forward.1} parent=1 // pred_region
      %s39 = ssub.s32 64, 64
      %40 = vsyncadd [#allocation5], %s39
      %s42 = sshll.u32 [#allocation6], 4
      %s43 = int_to_ptr.vmem [resolvable:$true] %s42
      %45 = dma.hbm_to_vmem [thread:$0]  %s2, 64, %s43, [#allocation5]
    $region13: #{actor_critic_forward.1} parent=1 // pred_fallthru
      _
    // Predicated region
    $region14: #{actor_critic_forward.1} parent=1 // pred_check
      _
    $region15: #{actor_critic_forward.1} parent=1 // pred_check_branch
      %47 = sbr.rel (0) target = $region17
    $region16: #{actor_critic_forward.1} parent=1 // pred_region
      %s49 = ssub.s32 2048, 2048
      %50 = vsyncadd [#allocation8], %s49
      %s51 = sshll.u32 [#allocation7], 4
      %s52 = int_to_ptr.vmem [resolvable:$true] %s51
      %57 = dma.hbm_to_vmem [thread:$0]  %s3, 2048, %s52, [#allocation8], 64, 64, 4
    $region17: #{actor_critic_forward.1} parent=1 // pred_fallthru
      _
    // Predicated region
    $region18: #{actor_critic_forward.1} parent=1 // pred_check
      _
    $region19: #{actor_critic_forward.1} parent=1 // pred_check_branch
      %59 = sbr.rel (0) target = $region21
    $region20: #{actor_critic_forward.1} parent=1 // pred_region
      _
    $region21: #{actor_critic_forward.1} parent=1 // pred_fallthru
      _
    // Predicated region
    $region22: #{actor_critic_forward.1} parent=1 // pred_check
      _
    $region23: #{actor_critic_forward.1} parent=1 // pred_check_branch
      %61 = sbr.rel (0) target = $region25
    $region24: #{actor_critic_forward.1} parent=1 // pred_region
      _
    $region25: #{actor_critic_forward.1} parent=1 // pred_fallthru
      _
    // Predicated region
    $region26: #{actor_critic_forward.1} parent=1 // pred_check
      _
    $region27: #{actor_critic_forward.1} parent=1 // pred_check_branch
      %63 = sbr.rel (0) target = $region29
    $region28: #{actor_critic_forward.1} parent=1 // pred_region
      %64 = dma.done [#allocation3], 128
    $region29: #{actor_critic_forward.1} parent=1 // pred_fallthru
      _
    // Predicated region
    $region30: #{actor_critic_forward.1} parent=1 // pred_check
      _
    $region31: #{actor_critic_forward.1} parent=1 // pred_check_branch
      %66 = sbr.rel (0) target = $region33
    $region32: #{actor_critic_forward.1} parent=1 // pred_region
      %67 = dma.done [#allocation5], 2048
    $region33: #{actor_critic_forward.1} parent=1 // pred_fallthru
      _
    // Predicated region
    $region34: #{actor_critic_forward.1} parent=1 // pred_check
      _
    $region35: #{actor_critic_forward.1} parent=1 // pred_check_branch
      %69 = sbr.rel (0) target = $region37
    $region36: #{actor_critic_forward.1} parent=1 // pred_region
      %70 = dma.done [#allocation5], 64
    $region37: #{actor_critic_forward.1} parent=1 // pred_fallthru
      _
    // Predicated region
    $region38: #{actor_critic_forward.1} parent=1 // pred_check
      _
    $region39: #{actor_critic_forward.1} parent=1 // pred_check_branch
      %72 = sbr.rel (0) target = $region41
    $region40: #{actor_critic_forward.1} parent=1 // pred_region
      %73 = dma.done [#allocation8], 2048
    $region41: #{actor_critic_forward.1} parent=1 // pred_fallthru
      _
    %v75 = vld [vmem:[#allocation2] sm:$0xff]
    %v76 = vpack.c.bf16 %v75, %v75
    %v77 = vld [vmem:[#allocation4] sm:$0xff]
    %v78 = vld [vmem:[#allocation4 + $0x8] sm:$0xff]
    %v79 = vld [vmem:[#allocation4 + $0x10] sm:$0xff]
    %v80 = vld [vmem:[#allocation4 + $0x18] sm:$0xff]
    %v81 = vld [vmem:[#allocation4 + $0x20] sm:$0xff]
    %v82 = vld [vmem:[#allocation4 + $0x28] sm:$0xff]
    %v83 = vld [vmem:[#allocation4 + $0x30] sm:$0xff]
    %v84 = vld [vmem:[#allocation4 + $0x38] sm:$0xff]
    %v85 = vld [vmem:[#allocation4 + $0x40] sm:$0xff]
    %v86 = vld [vmem:[#allocation4 + $0x48] sm:$0xff]
    %v87 = vld [vmem:[#allocation4 + $0x50] sm:$0xff]
    %v88 = vld [vmem:[#allocation4 + $0x58] sm:$0xff]
    %v89 = vld [vmem:[#allocation4 + $0x60] sm:$0xff]
    %v90 = vld [vmem:[#allocation4 + $0x68] sm:$0xff]
    %v91 = vld [vmem:[#allocation4 + $0x70] sm:$0xff]
    %v92 = vld [vmem:[#allocation4 + $0x78] sm:$0xff]
    %v93 = vld [vmem:[#allocation6] sm:$0xf]
    %v95 = vlaneseq
    %v96 = vshrl.u32 %v95, 7
    %v97 = vsub.s32 0, %v96
    %v98 = vrot.slane %v93, %v97
    %v99 = vlaneseq
    %v100 = vshrl.u32 %v99, 7
    %v101 = vsub.s32 1, %v100
    %v102 = vrot.slane %v93, %v101
    %v103 = vlaneseq
    %v104 = vshrl.u32 %v103, 7
    %v105 = vsub.s32 2, %v104
    %v106 = vrot.slane %v93, %v105
    %v107 = vlaneseq
    %v108 = vshrl.u32 %v107, 7
    %v109 = vsub.s32 3, %v108
    %v110 = vrot.slane %v93, %v109
    %v131 = vunpack.c.l.b16 %v77
    %v132 = vunpack.c.h.b16 %v77
    %v133 = vunpack.c.l.b16 %v78
    %v134 = vunpack.c.h.b16 %v78
    %v135 = vunpack.c.l.b16 %v79
    %v136 = vunpack.c.h.b16 %v79
    %v137 = vunpack.c.l.b16 %v80
    %v138 = vunpack.c.h.b16 %v80
    %v139 = vunpack.c.l.b16 %v81
    %v140 = vunpack.c.h.b16 %v81
    %v141 = vunpack.c.l.b16 %v82
    %v142 = vunpack.c.h.b16 %v82
    %v143 = vunpack.c.l.b16 %v83
    %v144 = vunpack.c.h.b16 %v83
    %v145 = vunpack.c.l.b16 %v84
    %v146 = vunpack.c.h.b16 %v84
    %v147 = vunpack.c.l.b16 %v85
    %v148 = vunpack.c.h.b16 %v85
    %v149 = vunpack.c.l.b16 %v86
    %v150 = vunpack.c.h.b16 %v86
    %v151 = vunpack.c.l.b16 %v87
    %v152 = vunpack.c.h.b16 %v87
    %v153 = vunpack.c.l.b16 %v88
    %v154 = vunpack.c.h.b16 %v88
    %v155 = vunpack.c.l.b16 %v89
    %v156 = vunpack.c.h.b16 %v89
    %v157 = vunpack.c.l.b16 %v90
    %v158 = vunpack.c.h.b16 %v90
    %v159 = vunpack.c.l.b16 %v91
    %v160 = vunpack.c.h.b16 %v91
    %v161 = vunpack.c.l.b16 %v92
    %v162 = vunpack.c.h.b16 %v92
    %v163 = vpack.c.b16 %v135, %v131
    %v164 = vpack.c.b16 %v136, %v132
    %v165 = vpack.c.b16 %v137, %v133
    %v166 = vpack.c.b16 %v138, %v134
    %v167 = vpack.c.b16 %v143, %v139
    %v168 = vpack.c.b16 %v144, %v140
    %v169 = vpack.c.b16 %v145, %v141
    %v170 = vpack.c.b16 %v146, %v142
    %v171 = vpack.c.b16 %v151, %v147
    %v172 = vpack.c.b16 %v152, %v148
    %v173 = vpack.c.b16 %v153, %v149
    %v174 = vpack.c.b16 %v154, %v150
    %v175 = vpack.c.b16 %v159, %v155
    %v176 = vpack.c.b16 %v160, %v156
    %v177 = vpack.c.b16 %v161, %v157
    %v178 = vpack.c.b16 %v162, %v158
    %vm195 = vcmask 523264
    %v197 = vsel %vm195, %v76, 0
    %199 = vmatprep.subr.bf16.mxu0 %v164
    %200 = vmatpush1.bf16.msra.mxu0 %v163
    %201 = vmatprep.subr.bf16.mxu0 %v168
    %202 = vmatpush1.bf16.msra.mxu0 %v167
    %203 = vmatprep.subr.bf16.mxu0 %v172
    %204 = vmatpush1.bf16.msra.mxu0 %v171
    %205 = vmatprep.subr.bf16.mxu0 %v176
    %206 = vmatpush1.bf16.msra.mxu0 %v175
    %207 = vmatprep.subr.bf16.mxu0 0
    %208 = vmatpush1.bf16.msra.mxu0 0
    %209 = vmatprep.subr.bf16.mxu0 0
    %210 = vmatpush1.bf16.msra.mxu0 0
    %211 = vmatprep.subr.bf16.mxu0 0
    %212 = vmatpush1.bf16.msra.mxu0 0
    %213 = vmatprep.subr.bf16.mxu0 0
    %214 = vmatpush1.bf16.msra.mxu0 0
    %215 = vmatprep.subr.bf16.mxu0 0
    %216 = vmatpush1.bf16.msra.mxu0 0
    %217 = vmatprep.subr.bf16.mxu0 0
    %218 = vmatpush1.bf16.msra.mxu0 0
    %219 = vmatprep.subr.bf16.mxu0 0
    %220 = vmatpush1.bf16.msra.mxu0 0
    %221 = vmatprep.subr.bf16.mxu0 0
    %222 = vmatpush1.bf16.msra.mxu0 0
    %223 = vmatprep.subr.bf16.mxu0 0
    %224 = vmatpush1.bf16.msra.mxu0 0
    %225 = vmatprep.subr.bf16.mxu0 0
    %226 = vmatpush1.bf16.msra.mxu0 0
    %227 = vmatprep.subr.bf16.mxu0 0
    %228 = vmatpush1.bf16.msra.mxu0 0
    %229 = vmatprep.subr.bf16.mxu0 0
    %230 = vmatpush1.bf16.msra.mxu0 0
    %231 = vmatprep.mubr.bf16.mxu0 0
    %232 = vmatmul.mubr.bf16.gmra.mrb[0].mxu0 %v197
    %v233 = vpop.f32.mrb[0].mxu0
    %v234 = vadd.f32 %v98, %v233
    %v235 = vpop.f32.mrb[0].mxu0
    %v236 = vadd.f32 %v102, %v235
    %v237 = vpop.f32.mrb[0].mxu0
    %v238 = vpop.f32.mrb[0].mxu0
    %239 = vdwg.mxu0
    %240 = vmatprep.subr.bf16.mxu0 %v166
    %241 = vmatpush1.bf16.msra.mxu0 %v165
    %242 = vmatprep.subr.bf16.mxu0 %v170
    %243 = vmatpush1.bf16.msra.mxu0 %v169
    %244 = vmatprep.subr.bf16.mxu0 %v174
    %245 = vmatpush1.bf16.msra.mxu0 %v173
    %246 = vmatprep.subr.bf16.mxu0 %v178
    %247 = vmatpush1.bf16.msra.mxu0 %v177
    %248 = vmatprep.subr.bf16.mxu0 0
    %249 = vmatpush1.bf16.msra.mxu0 0
    %250 = vmatprep.subr.bf16.mxu0 0
    %251 = vmatpush1.bf16.msra.mxu0 0
    %252 = vmatprep.subr.bf16.mxu0 0
    %253 = vmatpush1.bf16.msra.mxu0 0
    %254 = vmatprep.subr.bf16.mxu0 0
    %255 = vmatpush1.bf16.msra.mxu0 0
    %256 = vmatprep.subr.bf16.mxu0 0
    %257 = vmatpush1.bf16.msra.mxu0 0
    %258 = vmatprep.subr.bf16.mxu0 0
    %259 = vmatpush1.bf16.msra.mxu0 0
    %260 = vmatprep.subr.bf16.mxu0 0
    %261 = vmatpush1.bf16.msra.mxu0 0
    %262 = vmatprep.subr.bf16.mxu0 0
    %263 = vmatpush1.bf16.msra.mxu0 0
    %264 = vmatprep.subr.bf16.mxu0 0
    %265 = vmatpush1.bf16.msra.mxu0 0
    %266 = vmatprep.subr.bf16.mxu0 0
    %267 = vmatpush1.bf16.msra.mxu0 0
    %268 = vmatprep.subr.bf16.mxu0 0
    %269 = vmatpush1.bf16.msra.mxu0 0
    %270 = vmatprep.subr.bf16.mxu0 0
    %271 = vmatpush1.bf16.msra.mxu0 0
    %272 = vmatprep.mubr.bf16.mxu0 0
    %273 = vmatmul.mubr.bf16.gmra.mrb[0].mxu0 %v197
    %v274 = vpop.f32.mrb[0].mxu0
    %v275 = vadd.f32 %v106, %v274
    %v276 = vpop.f32.mrb[0].mxu0
    %v277 = vadd.f32 %v110, %v276
    %v278 = vpop.f32.mrb[0].mxu0
    %v279 = vpop.f32.mrb[0].mxu0
    %280 = vdwg.mxu0
    %v281 = vmax.f32 %v234, 0.0
    %v282 = vmax.f32 %v236, 0.0
    %v283 = vmax.f32 %v275, 0.0
    %v284 = vmax.f32 %v277, 0.0
    %v285 = vpack.c.bf16 %v281, %v281
    %v286 = vpack.c.bf16 %v282, %v282
    %v287 = vld [vmem:[#allocation7] sm:$0xf]
    %v288 = vld [vmem:[#allocation7 + $0x4] sm:$0xf]
    %v289 = vld [vmem:[#allocation7 + $0x8] sm:$0xf]
    %v290 = vld [vmem:[#allocation7 + $0xc] sm:$0xf]
    %v291 = vld [vmem:[#allocation7 + $0x10] sm:$0xf]
    %v292 = vld [vmem:[#allocation7 + $0x14] sm:$0xf]
    %v293 = vld [vmem:[#allocation7 + $0x18] sm:$0xf]
    %v294 = vld [vmem:[#allocation7 + $0x1c] sm:$0xf]
    %v295 = vld [vmem:[#allocation7 + $0x20] sm:$0xf]
    %v296 = vld [vmem:[#allocation7 + $0x24] sm:$0xf]
    %v297 = vld [vmem:[#allocation7 + $0x28] sm:$0xf]
    %v298 = vld [vmem:[#allocation7 + $0x2c] sm:$0xf]
    %v299 = vld [vmem:[#allocation7 + $0x30] sm:$0xf]
    %v300 = vld [vmem:[#allocation7 + $0x34] sm:$0xf]
    %v301 = vld [vmem:[#allocation7 + $0x38] sm:$0xf]
    %v302 = vld [vmem:[#allocation7 + $0x3c] sm:$0xf]
    %v303 = vld [vmem:[#allocation7 + $0x40] sm:$0xf]
    %v304 = vld [vmem:[#allocation7 + $0x44] sm:$0xf]
    %v305 = vld [vmem:[#allocation7 + $0x48] sm:$0xf]
    %v306 = vld [vmem:[#allocation7 + $0x4c] sm:$0xf]
    %v307 = vld [vmem:[#allocation7 + $0x50] sm:$0xf]
    %v308 = vld [vmem:[#allocation7 + $0x54] sm:$0xf]
    %v309 = vld [vmem:[#allocation7 + $0x58] sm:$0xf]
    %v310 = vld [vmem:[#allocation7 + $0x5c] sm:$0xf]
    %v311 = vld [vmem:[#allocation7 + $0x60] sm:$0xf]
    %v312 = vld [vmem:[#allocation7 + $0x64] sm:$0xf]
    %v313 = vld [vmem:[#allocation7 + $0x68] sm:$0xf]
    %v314 = vld [vmem:[#allocation7 + $0x6c] sm:$0xf]
    %v315 = vld [vmem:[#allocation7 + $0x70] sm:$0xf]
    %v316 = vld [vmem:[#allocation7 + $0x74] sm:$0xf]
    %v317 = vld [vmem:[#allocation7 + $0x78] sm:$0xf]
    %v318 = vld [vmem:[#allocation7 + $0x7c] sm:$0xf]
    %v319 = vld [vmem:[%s4] sm:$0x3]
    %v321 = vlaneseq
    %v322 = vshrl.u32 %v321, 7
    %v323 = vsub.s32 0, %v322
    %v324 = vrot.slane %v319, %v323
    %v325 = vlaneseq
    %v326 = vshrl.u32 %v325, 7
    %v327 = vsub.s32 1, %v326
    %v328 = vrot.slane %v319, %v327
    %v331 = vmul.f32 %v283, %v324
    %v332 = vmul.f32 %v284, %v328
    %v333 = vadd.f32 %v331, %v332
    %334 = vadd.xlane.f32.xlu0 %v333
    %v335 = vpop.xlane.xlu0 %334
    %v336 = vlaneseq
    %v337 = vand.u32 %v336, 127
    %v338 = vld [vmem:[%s5] sm:$0x1]
    %v340 = vlaneseq
    %v341 = vshrl.u32 %v340, 7
    %v342 = vsub.s32 0, %v341
    %v343 = vrot.slane %v338, %v342
    %v377 = vunpack.c.l.b16 %v287
    %v378 = vunpack.c.l.b16 %v288
    %v379 = vunpack.c.l.b16 %v289
    %v380 = vunpack.c.l.b16 %v290
    %v381 = vunpack.c.l.b16 %v291
    %v382 = vunpack.c.l.b16 %v292
    %v383 = vunpack.c.l.b16 %v293
    %v384 = vunpack.c.l.b16 %v294
    %v385 = vunpack.c.l.b16 %v295
    %v386 = vunpack.c.l.b16 %v296
    %v387 = vunpack.c.l.b16 %v297
    %v388 = vunpack.c.l.b16 %v298
    %v389 = vunpack.c.l.b16 %v299
    %v390 = vunpack.c.l.b16 %v300
    %v391 = vunpack.c.l.b16 %v301
    %v392 = vunpack.c.l.b16 %v302
    %v393 = vunpack.c.l.b16 %v303
    %v394 = vunpack.c.l.b16 %v304
    %v395 = vunpack.c.l.b16 %v305
    %v396 = vunpack.c.l.b16 %v306
    %v397 = vunpack.c.l.b16 %v307
    %v398 = vunpack.c.l.b16 %v308
    %v399 = vunpack.c.l.b16 %v309
    %v400 = vunpack.c.l.b16 %v310
    %v401 = vunpack.c.l.b16 %v311
    %v402 = vunpack.c.l.b16 %v312
    %v403 = vunpack.c.l.b16 %v313
    %v404 = vunpack.c.l.b16 %v314
    %v405 = vunpack.c.l.b16 %v315
    %v406 = vunpack.c.l.b16 %v316
    %v407 = vunpack.c.l.b16 %v317
    %v408 = vunpack.c.l.b16 %v318
    %v409 = vpack.c.b16 %v378, %v377
    %v410 = vpack.c.b16 %v380, %v379
    %v411 = vpack.c.b16 %v382, %v381
    %v412 = vpack.c.b16 %v384, %v383
    %v413 = vpack.c.b16 %v386, %v385
    %v414 = vpack.c.b16 %v388, %v387
    %v415 = vpack.c.b16 %v390, %v389
    %v416 = vpack.c.b16 %v392, %v391
    %v417 = vpack.c.b16 %v394, %v393
    %v418 = vpack.c.b16 %v396, %v395
    %v419 = vpack.c.b16 %v398, %v397
    %v420 = vpack.c.b16 %v400, %v399
    %v421 = vpack.c.b16 %v402, %v401
    %v422 = vpack.c.b16 %v404, %v403
    %v423 = vpack.c.b16 %v406, %v405
    %v424 = vpack.c.b16 %v408, %v407
    %441 = vmatprep.subr.bf16.mxu0 0
    %442 = vmatpush1.bf16.msra.mxu0 %v409
    %443 = vmatprep.subr.bf16.mxu0 0
    %444 = vmatpush1.bf16.msra.mxu0 %v410
    %445 = vmatprep.subr.bf16.mxu0 0
    %446 = vmatpush1.bf16.msra.mxu0 %v411
    %447 = vmatprep.subr.bf16.mxu0 0
    %448 = vmatpush1.bf16.msra.mxu0 %v412
    %449 = vmatprep.subr.bf16.mxu0 0
    %450 = vmatpush1.bf16.msra.mxu0 %v413
    %451 = vmatprep.subr.bf16.mxu0 0
    %452 = vmatpush1.bf16.msra.mxu0 %v414
    %453 = vmatprep.subr.bf16.mxu0 0
    %454 = vmatpush1.bf16.msra.mxu0 %v415
    %455 = vmatprep.subr.bf16.mxu0 0
    %456 = vmatpush1.bf16.msra.mxu0 %v416
    %457 = vmatprep.subr.bf16.mxu0 0
    %458 = vmatpush1.bf16.msra.mxu0 %v417
    %459 = vmatprep.subr.bf16.mxu0 0
    %460 = vmatpush1.bf16.msra.mxu0 %v418
    %461 = vmatprep.subr.bf16.mxu0 0
    %462 = vmatpush1.bf16.msra.mxu0 %v419
    %463 = vmatprep.subr.bf16.mxu0 0
    %464 = vmatpush1.bf16.msra.mxu0 %v420
    %465 = vmatprep.subr.bf16.mxu0 0
    %466 = vmatpush1.bf16.msra.mxu0 %v421
    %467 = vmatprep.subr.bf16.mxu0 0
    %468 = vmatpush1.bf16.msra.mxu0 %v422
    %469 = vmatprep.subr.bf16.mxu0 0
    %470 = vmatpush1.bf16.msra.mxu0 %v423
    %471 = vmatprep.subr.bf16.mxu0 0
    %472 = vmatpush1.bf16.msra.mxu0 %v424
    %473 = vmatprep.mubr.bf16.mxu0 %v286
    %474 = vmatmul.mubr.bf16.gmra.mrb[0].mxu0 %v285
    %v475 = vpop.f32.mrb[0].mxu0
    %v476 = vadd.f32 %v343, %v475
    %v477 = vpop.f32.mrb[0].mxu0
    %v478 = vpop.f32.mrb[0].mxu0
    %v479 = vpop.f32.mrb[0].mxu0
    %480 = vdwg.mxu0
    %vm481 = vcmp.eq.s32.totalorder %v337, 16
    %v482 = vsel %vm481, 1, 0
    %vm483 = vcmp.eq.s32.totalorder %v482, 1
    %v484 = vsel %vm483, %v335, 0.0
    %v485 = vadd.f32 %v476, %v484
    %486 = vst [vmem:[%s6] sm:$0xff] %v485
    // Predicated region
    $region42: #{actor_critic_forward.1} parent=1 // pred_check
      _
    $region43: #{actor_critic_forward.1} parent=1 // pred_check_branch
      %488 = sbr.rel (0) target = $region45
    $region44: #{actor_critic_forward.1} parent=1 // pred_region
      _
    $region45: #{actor_critic_forward.1} parent=1 // pred_fallthru
      _
    // Predicated region
    $region46: #{actor_critic_forward.1} parent=1 // pred_check
      _
    $region47: #{actor_critic_forward.1} parent=1 // pred_check_branch
      %490 = sbr.rel (0) target = $region49
    $region48: #{actor_critic_forward.1} parent=1 // pred_region
      _
    $region49: #{actor_critic_forward.1} parent=1 // pred_fallthru
      _
    %491 = vsyncpa [#allocation3], 1
    %492 = vsyncpa [#allocation5], 1
    %493 = vsyncpa [#allocation8], 1

</llo_original>
